<compile_context>
chip_gen: v7x
topology: tpu7x:2x2x1
jax: 0.10.0
libtpu: 0.0.40
codegen_flags: <defaults>
</compile_context>

<pallas_src>
import functools

import jax
import jax.numpy as jnp
from jax.experimental import pallas as pl
from jax.experimental.pallas import tpu as pltpu


def layernorm_kernel(x_ref, scale_ref, shift_ref, o_ref, *, eps):
    # x_ref: (tile_rows, emb_dim) in VMEM; accumulate stats in f32.
    x = x_ref[...].astype(jnp.float32)
    mean = jnp.mean(x, axis=-1, keepdims=True)
    # unbiased=False -> population variance (divide by N), two-pass for safety.
    var = jnp.mean((x - mean) ** 2, axis=-1, keepdims=True)
    inv_std = jax.lax.rsqrt(var + eps)
    norm = (x - mean) * inv_std
    # scale/shift already f32 (cast hoisted to the wrapper), resident in VMEM.
    o_ref[...] = (scale_ref[...] * norm + shift_ref[...]).astype(o_ref.dtype)


def _num_tensorcores():
    """Best-effort TensorCores per chip (v7x: 2; v5e/v6e: 1)."""
    try:
        kind = jax.devices()[0].device_kind.lower()
        if "v7" in kind:
            return 2
    except Exception:
        pass
    return 1


def _pick_tile_rows(rows, emb_dim, dtype, num_tc):
    """Row-tile size: ~4 MiB per input block, sublane-aligned, >=2 MiB floor."""
    itemsize = jnp.dtype(dtype).itemsize
    sublane = max(8, 32 // itemsize)            # 8 rows f32, 16 bf16, 32 int8
    row_bytes = max(1, emb_dim * itemsize)

    target_bytes = 4 * 1024 * 1024              # per input tile
    tr = max(sublane, (target_bytes // row_bytes) // sublane * sublane)

    # Never exceed the (sublane-rounded) row count -- one (partial) block then.
    rows_ceil = ((rows + sublane - 1) // sublane) * sublane
    tr = max(sublane, min(tr, rows_ceil))

    # Megacore (v7x only): keep a few steps so both TCs get work, but never
    # shrink a tile below ~2 MiB just to manufacture grid steps. Single-TC
    # chips (v5e/v6e) only need a couple of steps for DMA/compute overlap.
    min_steps = 6 if num_tc > 1 else 3
    floor_rows = max(sublane,
                     ((2 * 1024 * 1024) // row_bytes) // sublane * sublane)
    while (tr > floor_rows
           and pl.cdiv(rows, tr) < min_steps
           and rows > min_steps * sublane):
        new_tr = max(floor_rows, ((tr // 2) // sublane) * sublane)
        if new_tr == tr:
            break
        tr = new_tr
    return tr


def layernorm(x, scale, shift, eps=1e-5, tile_rows=None):
    """x: (..., emb_dim). scale/shift: (emb_dim,). Matches PyTorch LayerNorm."""
    orig_shape = x.shape
    emb_dim = orig_shape[-1]
    rows = 1
    for d in orig_shape[:-1]:
        rows *= d

    x2 = x.reshape(rows, emb_dim)
    # Hoist parameter casts out of the kernel: cast once, keep f32 resident.
    scale2 = scale.astype(jnp.float32).reshape(1, emb_dim)
    shift2 = shift.astype(jnp.float32).reshape(1, emb_dim)

    if tile_rows is None:
        tile_rows = _pick_tile_rows(rows, emb_dim, x.dtype, _num_tensorcores())

    # Partial last block handled by Pallas (OOB reads are per-row garbage that
    # never crosses rows; OOB writes are masked). No wrapper pad/slice passes.
    grid_rows = pl.cdiv(rows, tile_rows)

    kernel = functools.partial(layernorm_kernel, eps=eps)

    out = pl.pallas_call(
        kernel,
        out_shape=jax.ShapeDtypeStruct((rows, emb_dim), x.dtype),
        grid_spec=pltpu.PrefetchScalarGridSpec(
            num_scalar_prefetch=0,
            grid=(grid_rows,),
            in_specs=[
                pl.BlockSpec((tile_rows, emb_dim), lambda i: (i, 0)),
                pl.BlockSpec((1, emb_dim), lambda i: (0, 0)),
                pl.BlockSpec((1, emb_dim), lambda i: (0, 0)),
            ],
            out_specs=pl.BlockSpec((tile_rows, emb_dim), lambda i: (i, 0)),
        ),
        compiler_params=pltpu.CompilerParams(
            dimension_semantics=("parallel",),
            # 2x-buffered ~4 MiB in/out tiles + f32 temps; 48 MiB leaves
            # headroom under v7x's 64 MiB physical VMEM and is free on
            # v5e/v6e (128 MiB).
            vmem_limit_bytes=48 * 1024 * 1024,
        ),
    )(x2, scale2, shift2)

    return out.reshape(orig_shape)


if __name__ == "__main__":
    # Module: LayerNorm(emb_dim) with scale = ones(emb_dim), shift = zeros(emb_dim)
    batch, seq, emb_dim = 2, 8, 32
    key = jax.random.PRNGKey(0)
    x = jax.random.normal(key, (batch, seq, emb_dim), dtype=jnp.float32)

    # Deterministic parameter init (matches nn.Parameter(torch.ones/zeros))
    scale = jnp.ones((emb_dim,), dtype=jnp.float32)
    shift = jnp.zeros((emb_dim,), dtype=jnp.float32)

    out = jax.block_until_ready(layernorm(x, scale, shift))

    # Reference check against plain-JAX implementation of the PyTorch forward
    mean = jnp.mean(x, axis=-1, keepdims=True)
    var = jnp.mean((x - mean) ** 2, axis=-1, keepdims=True)
    ref = scale * ((x - mean) / jnp.sqrt(var + 1e-5)) + shift
    assert jnp.allclose(out, ref, atol=1e-5, rtol=1e-5), "mismatch vs reference"

    # Partial last block on a multi-step grid (forced small tile): validates
    # the cdiv grid + masked-write path that replaced the wrapper pad/slice.
    x_part = jax.random.normal(jax.random.PRNGKey(2), (5, 8, emb_dim),
                               dtype=jnp.float32)
    out_part = jax.block_until_ready(layernorm(x_part, scale, shift,
                                               tile_rows=16))
    mp = jnp.mean(x_part, axis=-1, keepdims=True)
    vp = jnp.mean((x_part - mp) ** 2, axis=-1, keepdims=True)
    ref_part = scale * ((x_part - mp) / jnp.sqrt(vp + 1e-5)) + shift
    assert jnp.allclose(out_part, ref_part, atol=1e-5, rtol=1e-5)

    # bf16 path with a row count that is not a multiple of the 16-row sublane
    # packing (21 rows) -> single partial block.
    x_odd = jax.random.normal(jax.random.PRNGKey(1), (3, 7, emb_dim),
                              dtype=jnp.bfloat16)
    out_odd = jax.block_until_ready(layernorm(x_odd, scale, shift))
    xf = x_odd.astype(jnp.float32)
    m2 = jnp.mean(xf, axis=-1, keepdims=True)
    v2 = jnp.mean((xf - m2) ** 2, axis=-1, keepdims=True)
    ref_odd = (scale * ((xf - m2) / jnp.sqrt(v2 + 1e-5)) + shift).astype(jnp.bfloat16)
    assert jnp.allclose(out_odd.astype(jnp.float32),
                        ref_odd.astype(jnp.float32), atol=2e-2, rtol=2e-2)

    print("KERNEL_OK")
</pallas_src>

<mosaic_0001>
module attributes {stable_mosaic.version = 11 : i64} {
  func.func @layernorm_kernel(%arg0: i32, %arg1: memref<16x32xf32, #tpu.memory_space<vmem>>, %arg2: memref<1x32xf32, #tpu.memory_space<vmem>>, %arg3: memref<1x32xf32, #tpu.memory_space<vmem>>, %arg4: memref<16x32xf32, #tpu.memory_space<vmem>>) attributes {dimension_semantics = [#tpu.dimension_semantics<parallel>], iteration_bounds = array<i64: 1>, scalar_prefetch = 0 : i64, scratch_operands = 0 : i64, tpu.core_type = #tpu.core_type<tc>, window_params = [{transform_indices = @transform_0, window_bounds = array<i64: 16, 32>}, {pipeline_mode = #tpu.pipeline_mode<synchronous>, transform_indices = @transform_1, window_bounds = array<i64: 1, 32>}, {pipeline_mode = #tpu.pipeline_mode<synchronous>, transform_indices = @transform_2, window_bounds = array<i64: 1, 32>}, {transform_indices = @transform_3, window_bounds = array<i64: 16, 32>}]} {
    %c0 = arith.constant 0 : index
    %c0_0 = arith.constant 0 : index
    %0 = vector.load %arg1[%c0, %c0_0] : memref<16x32xf32, #tpu.memory_space<vmem>>, vector<16x32xf32>
    %cst = arith.constant dense<0.000000e+00> : vector<16xf32>
    %1 = vector.multi_reduction <add>, %0, %cst [1] : vector<16x32xf32> to vector<16xf32>
    %2 = vector.shape_cast %1 : vector<16xf32> to vector<16x1xf32>
    %cst_1 = arith.constant 3.200000e+01 : f32
    %3 = vector.broadcast %cst_1 : f32 to vector<16x1xf32>
    %4 = arith.divf %2, %3 : vector<16x1xf32>
    %5 = vector.broadcast %4 : vector<16x1xf32> to vector<16x32xf32>
    %6 = arith.subf %0, %5 : vector<16x32xf32>
    %7 = arith.mulf %6, %6 : vector<16x32xf32>
    %cst_2 = arith.constant dense<0.000000e+00> : vector<16xf32>
    %8 = vector.multi_reduction <add>, %7, %cst_2 [1] : vector<16x32xf32> to vector<16xf32>
    %9 = vector.shape_cast %8 : vector<16xf32> to vector<16x1xf32>
    %cst_3 = arith.constant 3.200000e+01 : f32
    %10 = vector.broadcast %cst_3 : f32 to vector<16x1xf32>
    %11 = arith.divf %9, %10 : vector<16x1xf32>
    %cst_4 = arith.constant 9.99999974E-6 : f32
    %12 = vector.broadcast %cst_4 : f32 to vector<16x1xf32>
    %13 = arith.addf %11, %12 : vector<16x1xf32>
    %14 = math.rsqrt %13 : vector<16x1xf32>
    %15 = vector.broadcast %4 : vector<16x1xf32> to vector<16x32xf32>
    %16 = arith.subf %0, %15 : vector<16x32xf32>
    %17 = vector.broadcast %14 : vector<16x1xf32> to vector<16x32xf32>
    %18 = arith.mulf %16, %17 : vector<16x32xf32>
    %c0_5 = arith.constant 0 : index
    %c0_6 = arith.constant 0 : index
    %19 = vector.load %arg2[%c0_5, %c0_6] : memref<1x32xf32, #tpu.memory_space<vmem>>, vector<1x32xf32>
    %20 = vector.broadcast %19 : vector<1x32xf32> to vector<16x32xf32>
    %21 = arith.mulf %20, %18 : vector<16x32xf32>
    %c0_7 = arith.constant 0 : index
    %c0_8 = arith.constant 0 : index
    %22 = vector.load %arg3[%c0_7, %c0_8] : memref<1x32xf32, #tpu.memory_space<vmem>>, vector<1x32xf32>
    %23 = vector.broadcast %22 : vector<1x32xf32> to vector<16x32xf32>
    %24 = arith.addf %21, %23 : vector<16x32xf32>
    %c0_9 = arith.constant 0 : index
    %c0_10 = arith.constant 0 : index
    %25 = vector.load %arg4[%c0_9, %c0_10] : memref<16x32xf32, #tpu.memory_space<vmem>>, vector<16x32xf32>
    tpu.vector_store %arg4[%c0_9, %c0_10], %24 {strides = array<i32>} : memref<16x32xf32, #tpu.memory_space<vmem>>, vector<16x32xf32>,
    return
  }
  func.func @transform_0(%arg0: i32) -> (i32, i32) {
    %c0_i32 = arith.constant 0 : i32
    %c0_i32_0 = arith.constant 0 : i32
    return %arg0, %c0_i32 : i32, i32
  }
  func.func @transform_1(%arg0: i32) -> (i32, i32) {
    %c0_i32 = arith.constant 0 : i32
    %c0_i32_0 = arith.constant 0 : i32
    %c0_i32_1 = arith.constant 0 : i32
    return %c0_i32, %c0_i32_0 : i32, i32
  }
  func.func @transform_2(%arg0: i32) -> (i32, i32) {
    %c0_i32 = arith.constant 0 : i32
    %c0_i32_0 = arith.constant 0 : i32
    %c0_i32_1 = arith.constant 0 : i32
    return %c0_i32, %c0_i32_0 : i32, i32
  }
  func.func @transform_3(%arg0: i32) -> (i32, i32) {
    %c0_i32 = arith.constant 0 : i32
    %c0_i32_0 = arith.constant 0 : i32
    return %arg0, %c0_i32 : i32, i32
  }
}

</mosaic_0001>

<llo_original>
// kernel: tpu_custom_call.1
$region0: #{tpu_custom_call.1}
  #allocation0 [shape = 'u32[]', space=smem, size = 0x4, offset = 0x4, fixed_abs, tag = 'smem constant byte address 0x4 - core index']
  #allocation1 [shape = 'u32[144,128]{1,0:T(1,128)}', space=vmem, size = 0x12000, scoped, tag = 'internal scratch']
  %s0 = inlined_call_operand.hbm [shape: f32[16,32], index: 0, kind: input, shape index: {}]
  %s1 = inlined_call_operand.vmem [shape: f32[1,32], index: 1, kind: input, shape index: {}]
  %s2 = inlined_call_operand.vmem [shape: f32[1,32], index: 2, kind: input, shape index: {}]
  %s3 = inlined_call_operand.hbm [shape: f32[16,32], index: 3, kind: output, shape index: {}]
  %s4 = sld [smem:[#allocation0]]
  $region26: #{tpu_custom_call.1} parent=0
    _
  %s6 = ssub.s32 1, %s4
  %s7 = scalar_select 0, %s6, %s4
  $region1: #{tpu_custom_call.1} parent=0
    #allocation2 [shape = 'u8[8192]{0}', space=vmem, size = 0x2000, scoped, tag = 'input window, operand 0, single buffered']
    #allocation3 [shape = 's32[1]{0}', space=sflag, size = 0x4, scoped, tag = 'scoped memory for tpu_custom_call.1']
    #allocation4 [shape = 's32[1]{0}', space=sflag, size = 0x4, scoped, tag = 'scoped memory for tpu_custom_call.1']
    #allocation5 [shape = 'u8[8192]{0}', space=vmem, size = 0x2000, scoped, tag = 'output window, operand 0, single buffered']
    %8 = vsyncpa [#allocation3], 0
    %9 = vsyncpa [#allocation4], 0
    // Predicated region
    $region2: #{tpu_custom_call.1} parent=1 // pred_check
      _
    $region3: #{tpu_custom_call.1} parent=1 // pred_check_branch
      %11 = sbr.rel (0) target = $region5
    $region4: #{tpu_custom_call.1} parent=1 // pred_region
      %s13 = ssub.s32 256, 256
      %14 = vsyncadd [#allocation3], %s13
      %s15 = sshll.u32 [#allocation2], 4
      %s16 = int_to_ptr.vmem [resolvable:$true] %s15
      %21 = dma.hbm_to_vmem [thread:$0]  %s0, 256, %s16, [#allocation3], 128, 128, 8
    $region5: #{tpu_custom_call.1} parent=1 // pred_fallthru
      _
    // Predicated region
    $region6: #{tpu_custom_call.1} parent=1 // pred_check
      _
    $region7: #{tpu_custom_call.1} parent=1 // pred_check_branch
      %23 = sbr.rel (0) target = $region9
    $region8: #{tpu_custom_call.1} parent=1 // pred_region
      _
    $region9: #{tpu_custom_call.1} parent=1 // pred_fallthru
      _
    // Predicated region
    $region10: #{tpu_custom_call.1} parent=1 // pred_check
      _
    $region11: #{tpu_custom_call.1} parent=1 // pred_check_branch
      %25 = sbr.rel (0) target = $region13
    $region12: #{tpu_custom_call.1} parent=1 // pred_region
      _
    $region13: #{tpu_custom_call.1} parent=1 // pred_fallthru
      _
    // Predicated region
    $region14: #{tpu_custom_call.1} parent=1 // pred_check
      _
    $region15: #{tpu_custom_call.1} parent=1 // pred_check_branch
      %27 = sbr.rel (0) target = $region17
    $region16: #{tpu_custom_call.1} parent=1 // pred_region
      %28 = dma.done [#allocation3], 256
    $region17: #{tpu_custom_call.1} parent=1 // pred_fallthru
      _
    %v29 = vld [vmem:[#allocation2] sm:$0xff]
    %v30 = vld [vmem:[#allocation2 + $0x8] sm:$0xff]
    %vm31 = vcmask 261120
    %v32 = vsel %vm31, %v29, 0.0
    %33 = vadd.xlane.f32.xlu0 %v32
    %v34 = vpop.xlane.xlu0 %33
    %v35 = vsel %vm31, %v30, 0.0
    %36 = vadd.xlane.f32.xlu0 %v35
    %v37 = vpop.xlane.xlu0 %36
    %v38 = vrcp.pop 32.0
    %v39 = vmul.f32 %v34, %v38
    %v40 = vmul.f32 %v37, %v38
    %v41 = vsub.f32 %v29, %v39
    %v42 = vsub.f32 %v30, %v40
    %v43 = vmul.f32 %v41, %v41
    %v44 = vmul.f32 %v42, %v42
    %v45 = vsel %vm31, %v43, 0.0
    %46 = vadd.xlane.f32.xlu0 %v45
    %v47 = vpop.xlane.xlu0 %46
    %v48 = vsel %vm31, %v44, 0.0
    %49 = vadd.xlane.f32.xlu0 %v48
    %v50 = vpop.xlane.xlu0 %49
    %v51 = vmul.f32 %v47, %v38
    %v52 = vmul.f32 %v50, %v38
    %v53 = vadd.f32 %v51, 1e-05
    %v54 = vadd.f32 %v52, 1e-05
    %v55 = vrsqrt.pop %v53
    %v56 = vrsqrt.pop %v54
    %v57 = vmul.f32 %v41, %v55
    %v58 = vmul.f32 %v42, %v56
    %v59 = vld [vmem:[%s1] sm:$0x1]
    %v61 = vlaneseq
    %v62 = vshrl.u32 %v61, 7
    %v63 = vsub.s32 0, %v62
    %v64 = vrot.slane %v59, %v63
    %v66 = vmul.f32 %v64, %v57
    %v67 = vmul.f32 %v64, %v58
    %v68 = vld [vmem:[%s2] sm:$0x1]
    %v70 = vlaneseq
    %v71 = vshrl.u32 %v70, 7
    %v72 = vsub.s32 0, %v71
    %v73 = vrot.slane %v68, %v72
    %v75 = vadd.f32 %v66, %v73
    %v76 = vadd.f32 %v67, %v73
    %77 = vst.msk [vmem:[#allocation5] sm:$0xff] %vm31, %v75
    %78 = vst.msk [vmem:[#allocation5 + $0x8] sm:$0xff] %vm31, %v76
    // Predicated region
    $region18: #{tpu_custom_call.1} parent=1 // pred_check
      _
    $region19: #{tpu_custom_call.1} parent=1 // pred_check_branch
      %80 = sbr.rel (0) target = $region21
    $region20: #{tpu_custom_call.1} parent=1 // pred_region
      %s82 = ssub.s32 256, 256
      %83 = vsyncadd [#allocation4], %s82
      %s84 = sshll.u32 [#allocation5], 4
      %s85 = int_to_ptr.vmem [resolvable:$true] %s84
      %90 = dma.vmem_to_hbm [thread:$0]  %s85, 256, %s3, [#allocation4], 128, 128, 8
    $region21: #{tpu_custom_call.1} parent=1 // pred_fallthru
      _
    // Predicated region
    $region22: #{tpu_custom_call.1} parent=1 // pred_check
      _
    $region23: #{tpu_custom_call.1} parent=1 // pred_check_branch
      %92 = sbr.rel (0) target = $region25
    $region24: #{tpu_custom_call.1} parent=1 // pred_region
      %93 = dma.done [#allocation4], 256
    $region25: #{tpu_custom_call.1} parent=1 // pred_fallthru
      _
    %94 = vsyncpa [#allocation3], 1
    %95 = vsyncpa [#allocation4], 1

</llo_original>
